<compile_context>
chip_gen: v5e
topology: v5e:2x2
jax: 0.10.0
libtpu: 0.0.40
codegen_flags: <defaults>
</compile_context>

<pallas_src>
import math

import numpy as np
import jax
import jax.numpy as jnp
from jax.experimental import pallas as pl
from jax.experimental.pallas import tpu as pltpu

DIM = 32          # sinusoidal embedding dim
OUTPUT_DIM = 64   # MLP hidden / output dim
BATCH = 8         # number of timesteps in the demo
HALF_DIM = DIM // 2

# Packed slab row layout (all segment starts multiples of 8 -> aligned slices).
_R_FREQ = 0                       # freqs  : row    0  (first HALF_DIM lanes used)
_R_W1S = _R_FREQ + 8              # W1_sin : rows [  8,  24)
_R_W1C = _R_W1S + HALF_DIM        # W1_cos : rows [ 24,  40)
_R_B1 = _R_W1C + HALF_DIM         # b1     : row   40  (segment padded to 8)
_R_W2 = _R_B1 + 8                 # W2     : rows [ 48, 112)
_R_B2 = _R_W2 + OUTPUT_DIM        # b2     : row  112  (segment padded to 8)
_PACK_ROWS = _R_B2 + 8            # 120 rows x 64 lanes f32 = 30 KiB, one DMA


def _timestep_embedding_kernel(t_ref, p_ref, o_ref):
    t = t_ref[...]                                   # (block_m, 1) f32
    freqs = p_ref[_R_FREQ:_R_FREQ + 1, :][:, :HALF_DIM]   # (1, HALF_DIM)
    args = t * freqs                                 # (block_m, HALF_DIM)

    # sin/cos halves hit the pre-split W1 separately: two small MXU matmuls
    # accumulating into the same f32 result, no concatenate/shuffle.
    w1_sin = p_ref[_R_W1S:_R_W1S + HALF_DIM, :]      # (HALF_DIM, OUTPUT_DIM)
    w1_cos = p_ref[_R_W1C:_R_W1C + HALF_DIM, :]      # (HALF_DIM, OUTPUT_DIM)
    b1 = p_ref[_R_B1:_R_B1 + 1, :]                   # (1, OUTPUT_DIM)

    h = jnp.dot(jnp.sin(args), w1_sin, preferred_element_type=jnp.float32)
    h = h + jnp.dot(jnp.cos(args), w1_cos, preferred_element_type=jnp.float32)
    h = h + b1
    h = h * jax.nn.sigmoid(h)                        # SiLU (EUP transcendental)

    w2 = p_ref[_R_W2:_R_W2 + OUTPUT_DIM, :]          # (OUTPUT_DIM, OUTPUT_DIM)
    b2 = p_ref[_R_B2:_R_B2 + 1, :]                   # (1, OUTPUT_DIM)
    out = jnp.dot(h, w2, preferred_element_type=jnp.float32) + b2
    o_ref[...] = out.astype(o_ref.dtype)


def pack_params(w1, b1, w2, b2):
    """Pack freqs + all MLP params into one contiguous (120, 64) f32 slab.

    w1: (DIM, OUTPUT_DIM), w2: (OUTPUT_DIM, OUTPUT_DIM)  -- (in, out) layout,
    i.e. transposed vs. PyTorch's nn.Linear (out, in). W1 is split into the
    sin half (rows that multiply sin(args)) and the cos half.
    Call this ONCE (host-side, inference packing) and reuse across steps.
    """
    w1 = np.asarray(w1, np.float32)
    packed = np.zeros((_PACK_ROWS, OUTPUT_DIM), np.float32)
    freqs = np.exp(np.arange(HALF_DIM, dtype=np.float32)
                   * (-math.log(10000.0) / (HALF_DIM - 1)))
    packed[_R_FREQ, :HALF_DIM] = freqs
    packed[_R_W1S:_R_W1S + HALF_DIM] = w1[:HALF_DIM]          # multiplies sin half
    packed[_R_W1C:_R_W1C + HALF_DIM] = w1[HALF_DIM:]          # multiplies cos half
    packed[_R_B1] = np.asarray(b1, np.float32)
    packed[_R_W2:_R_W2 + OUTPUT_DIM] = np.asarray(w2, np.float32)
    packed[_R_B2] = np.asarray(b2, np.float32)
    return jnp.asarray(packed)


def _round_up(x, m):
    return (x + m - 1) // m * m


@jax.jit
def timestep_embedding(timestep, packed_params):
    """timestep: (B,) float, packed_params: (120, 64) f32 -> (B, OUTPUT_DIM) f32."""
    b = timestep.shape[0]
    # MXU-filling M block for large batches (256 on v6e/v7x; also fine on v5e),
    # otherwise the smallest multiple of 8 covering the batch.
    block_m = 256 if b >= 256 else _round_up(max(b, 1), 8)
    b_pad = _round_up(b, block_m)

    t2d = timestep.astype(jnp.float32).reshape(-1, 1)
    if b_pad != b:
        t2d = jnp.pad(t2d, ((0, b_pad - b), (0, 0)))

    cost = pl.CostEstimate(
        flops=2 * b_pad * (DIM * OUTPUT_DIM + OUTPUT_DIM * OUTPUT_DIM),
        transcendentals=b_pad * (2 * HALF_DIM + OUTPUT_DIM),
        bytes_accessed=(_PACK_ROWS * OUTPUT_DIM * 4
                        + b_pad * 4 + b_pad * OUTPUT_DIM * 4),
    )

    out = pl.pallas_call(
        _timestep_embedding_kernel,
        out_shape=jax.ShapeDtypeStruct((b_pad, OUTPUT_DIM), jnp.float32),
        grid_spec=pltpu.PrefetchScalarGridSpec(
            num_scalar_prefetch=0,
            grid=(b_pad // block_m,),
            in_specs=[
                pl.BlockSpec((block_m, 1), lambda i: (i, 0)),
                # Weight slab: same block index every step -> stays resident.
                pl.BlockSpec((_PACK_ROWS, OUTPUT_DIM), lambda i: (0, 0)),
            ],
            out_specs=pl.BlockSpec((block_m, OUTPUT_DIM), lambda i: (i, 0)),
        ),
        compiler_params=pltpu.CompilerParams(
            dimension_semantics=("parallel",)),
        cost_estimate=cost,
    )(t2d, packed_params)
    return out[:b]


def init_params(key):
    """Deterministic nn.Linear-style init: U(-1/sqrt(fan_in), 1/sqrt(fan_in))."""
    k1, k2, k3, k4 = jax.random.split(key, 4)
    lim1 = 1.0 / math.sqrt(DIM)
    lim2 = 1.0 / math.sqrt(OUTPUT_DIM)
    w1 = jax.random.uniform(k1, (DIM, OUTPUT_DIM), jnp.float32, -lim1, lim1)
    b1 = jax.random.uniform(k2, (OUTPUT_DIM,), jnp.float32, -lim1, lim1)
    w2 = jax.random.uniform(k3, (OUTPUT_DIM, OUTPUT_DIM), jnp.float32, -lim2, lim2)
    b2 = jax.random.uniform(k4, (OUTPUT_DIM,), jnp.float32, -lim2, lim2)
    return w1, b1, w2, b2


def _reference(timestep, w1, b1, w2, b2):
    """Pure-JAX reference mirroring the PyTorch forward ([sin, cos] order)."""
    half = DIM // 2
    freqs = jnp.exp(jnp.arange(half, dtype=jnp.float32)
                    * (-math.log(10000.0) / (half - 1)))
    args = timestep[:, None] * freqs[None, :]
    emb = jnp.concatenate([jnp.sin(args), jnp.cos(args)], axis=-1)
    h = emb @ w1 + b1
    h = h * jax.nn.sigmoid(h)
    return h @ w2 + b2


if __name__ == "__main__":
    key = jax.random.PRNGKey(0)
    kp, kt = jax.random.split(key)
    w1, b1, w2, b2 = init_params(kp)
    packed = pack_params(w1, b1, w2, b2)   # pack once, reuse across steps

    # Example timesteps (e.g. diffusion steps), deterministic.
    timestep = jax.random.uniform(kt, (BATCH,), jnp.float32, 0.0, 1000.0)

    out = timestep_embedding(timestep, packed)
    jax.block_until_ready(out)

    ref = _reference(timestep, w1, b1, w2, b2)
    assert out.shape == (BATCH, OUTPUT_DIM)
    assert jnp.allclose(out, ref, atol=1e-2, rtol=1e-2), (
        float(jnp.max(jnp.abs(out - ref))))

    print("KERNEL_OK")
</pallas_src>

<mosaic_0001>
module attributes {stable_mosaic.version = 11 : i64} {
  func.func @_timestep_embedding_kernel(%arg0: i32, %arg1: memref<8x1xf32, #tpu.memory_space<vmem>>, %arg2: memref<120x64xf32, #tpu.memory_space<vmem>>, %arg3: memref<8x64xf32, #tpu.memory_space<vmem>>) attributes {dimension_semantics = [#tpu.dimension_semantics<parallel>], iteration_bounds = array<i64: 1>, scalar_prefetch = 0 : i64, scratch_operands = 0 : i64, tpu.core_type = #tpu.core_type<tc>, window_params = [{transform_indices = @transform_0, window_bounds = array<i64: 8, 1>}, {pipeline_mode = #tpu.pipeline_mode<synchronous>, transform_indices = @transform_1, window_bounds = array<i64: 120, 64>}, {transform_indices = @transform_2, window_bounds = array<i64: 8, 64>}]} {
    %c0 = arith.constant 0 : index
    %c0_0 = arith.constant 0 : index
    %0 = vector.load %arg1[%c0, %c0_0] : memref<8x1xf32, #tpu.memory_space<vmem>>, vector<8x1xf32>
    %c0_1 = arith.constant 0 : index
    %c0_2 = arith.constant 0 : index
    %1 = vector.load %arg2[%c0_1, %c0_2] : memref<120x64xf32, #tpu.memory_space<vmem>>, vector<1x64xf32>
    %2 = vector.extract_strided_slice %1 {offsets = [0, 0], sizes = [1, 16], strides = [1, 1]} : vector<1x64xf32> to vector<1x16xf32>
    %3 = vector.broadcast %0 : vector<8x1xf32> to vector<8x16xf32>
    %4 = vector.broadcast %2 : vector<1x16xf32> to vector<8x16xf32>
    %5 = arith.mulf %3, %4 : vector<8x16xf32>
    %c8 = arith.constant 8 : index
    %c0_3 = arith.constant 0 : index
    %6 = vector.load %arg2[%c8, %c0_3] : memref<120x64xf32, #tpu.memory_space<vmem>>, vector<16x64xf32>
    %c24 = arith.constant 24 : index
    %c0_4 = arith.constant 0 : index
    %7 = vector.load %arg2[%c24, %c0_4] : memref<120x64xf32, #tpu.memory_space<vmem>>, vector<16x64xf32>
    %c40 = arith.constant 40 : index
    %c0_5 = arith.constant 0 : index
    %8 = vector.load %arg2[%c40, %c0_5] : memref<120x64xf32, #tpu.memory_space<vmem>>, vector<1x64xf32>
    %9 = math.sin %5 : vector<8x16xf32>
    %cst = arith.constant dense<0.000000e+00> : vector<8x64xf32>
    %10 = tpu.matmul %9, %6, %cst {dimension_numbers = #tpu.dot_dimension_numbers<[1], [0], [0], [1], [0, 0, 1, 1], [], []>} : vector<8x16xf32>, vector<16x64xf32>, vector<8x64xf32> -> vector<8x64xf32>
    %11 = math.cos %5 : vector<8x16xf32>
    %cst_6 = arith.constant dense<0.000000e+00> : vector<8x64xf32>
    %12 = tpu.matmul %11, %7, %cst_6 {dimension_numbers = #tpu.dot_dimension_numbers<[1], [0], [0], [1], [0, 0, 1, 1], [], []>} : vector<8x16xf32>, vector<16x64xf32>, vector<8x64xf32> -> vector<8x64xf32>
    %13 = arith.addf %10, %12 : vector<8x64xf32>
    %14 = vector.broadcast %8 : vector<1x64xf32> to vector<8x64xf32>
    %15 = arith.addf %13, %14 : vector<8x64xf32>
    %16 = arith.negf %15 : vector<8x64xf32>
    %17 = math.exp %16 : vector<8x64xf32>
    %cst_7 = arith.constant 1.000000e+00 : f32
    %18 = vector.broadcast %cst_7 : f32 to vector<8x64xf32>
    %19 = arith.addf %18, %17 : vector<8x64xf32>
    %20 = arith.divf %18, %19 : vector<8x64xf32>
    %21 = arith.mulf %15, %20 : vector<8x64xf32>
    %c48 = arith.constant 48 : index
    %c0_8 = arith.constant 0 : index
    %22 = vector.load %arg2[%c48, %c0_8] : memref<120x64xf32, #tpu.memory_space<vmem>>, vector<64x64xf32>
    %c112 = arith.constant 112 : index
    %c0_9 = arith.constant 0 : index
    %23 = vector.load %arg2[%c112, %c0_9] : memref<120x64xf32, #tpu.memory_space<vmem>>, vector<1x64xf32>
    %cst_10 = arith.constant dense<0.000000e+00> : vector<8x64xf32>
    %24 = tpu.matmul %21, %22, %cst_10 {dimension_numbers = #tpu.dot_dimension_numbers<[1], [0], [0], [1], [0, 0, 1, 1], [], []>} : vector<8x64xf32>, vector<64x64xf32>, vector<8x64xf32> -> vector<8x64xf32>
    %25 = vector.broadcast %23 : vector<1x64xf32> to vector<8x64xf32>
    %26 = arith.addf %24, %25 : vector<8x64xf32>
    %c0_11 = arith.constant 0 : index
    %c0_12 = arith.constant 0 : index
    %27 = vector.load %arg3[%c0_11, %c0_12] : memref<8x64xf32, #tpu.memory_space<vmem>>, vector<8x64xf32>
    tpu.vector_store %arg3[%c0_11, %c0_12], %26 {strides = array<i32>} : memref<8x64xf32, #tpu.memory_space<vmem>>, vector<8x64xf32>,
    return
  }
  func.func @transform_0(%arg0: i32) -> (i32, i32) {
    %c0_i32 = arith.constant 0 : i32
    %c0_i32_0 = arith.constant 0 : i32
    return %arg0, %c0_i32 : i32, i32
  }
  func.func @transform_1(%arg0: i32) -> (i32, i32) {
    %c0_i32 = arith.constant 0 : i32
    %c0_i32_0 = arith.constant 0 : i32
    %c0_i32_1 = arith.constant 0 : i32
    return %c0_i32, %c0_i32_0 : i32, i32
  }
  func.func @transform_2(%arg0: i32) -> (i32, i32) {
    %c0_i32 = arith.constant 0 : i32
    %c0_i32_0 = arith.constant 0 : i32
    return %arg0, %c0_i32 : i32, i32
  }
}

</mosaic_0001>

<llo_original>
// kernel: timestep_embedding.1
$region0: #{timestep_embedding.1}
  #allocation0 [shape = 'u32[]', space=smem, size = 0x4, offset = 0x4, fixed_abs, tag = 'smem constant byte address 0x4 - core index']
  #allocation1 [shape = 'u32[72,128]{1,0:T(1,128)}', space=vmem, size = 0x9000, scoped, tag = 'internal scratch']
  %s0 = inlined_call_operand.vmem [shape: f32[8,1], index: 0, kind: input, shape index: {}]
  %s1 = inlined_call_operand.vmem [shape: f32[120,64], index: 1, kind: input, shape index: {}]
  %s2 = inlined_call_operand.hbm [shape: f32[8,64], index: 2, kind: output, shape index: {}]
  %s3 = sld [smem:[#allocation0]]
  $region18: #{timestep_embedding.1} parent=0
    _
  %s5 = ssub.s32 1, %s3
  %s6 = scalar_select 0, %s5, %s3
  $region1: #{timestep_embedding.1} parent=0
    #allocation2 [shape = 'u8[4096]{0}', space=vmem, size = 0x1000, scoped, tag = 'output window, operand 0, single buffered']
    #allocation3 [shape = 's32[1]{0}', space=sflag, size = 0x4, scoped, tag = 'scoped memory for timestep_embedding.1']
    %7 = vsyncpa [#allocation3], 0
    // Predicated region
    $region2: #{timestep_embedding.1} parent=1 // pred_check
      _
    $region3: #{timestep_embedding.1} parent=1 // pred_check_branch
      %9 = sbr.rel (0) target = $region5
    $region4: #{timestep_embedding.1} parent=1 // pred_region
      _
    $region5: #{timestep_embedding.1} parent=1 // pred_fallthru
      _
    // Predicated region
    $region6: #{timestep_embedding.1} parent=1 // pred_check
      _
    $region7: #{timestep_embedding.1} parent=1 // pred_check_branch
      %11 = sbr.rel (0) target = $region9
    $region8: #{timestep_embedding.1} parent=1 // pred_region
      _
    $region9: #{timestep_embedding.1} parent=1 // pred_fallthru
      _
    %v12 = vld [vmem:[%s0] sm:$0xff]
    %v13 = vld [vmem:[%s1] sm:$0x1]
    %15 = vset.pattern.permute.xlu0 0
    %16 = vperm.xlu0 %15, %v12
    %v17 = vpop.permute.xlu0 %16
    %v19 = vperm.slane %v13, 0
    %v20 = vmul.f32 %v17, %v19
    %v21 = vld [vmem:[%s1 + $0x8] sm:$0xff]
    %v22 = vld [vmem:[%s1 + $0x10] sm:$0xff]
    %v23 = vld [vmem:[%s1 + $0x18] sm:$0xff]
    %v24 = vld [vmem:[%s1 + $0x20] sm:$0xff]
    %v25 = vld [vmem:[%s1 + $0x28] sm:$0x1]
    %v26 = vand.u32 2147483647, %v20
    %vm27 = vcmp.le.f32.partialorder %v26, 0.7853982
    %vm28 = vcmp.lt.s32.totalorder %v20, 0
    %v29 = vand.u32 %v20, 2139095040
    %v30 = vshrl.u32 %v29, 23
    %v31 = vsub.s32 %v30, 127
    %v32 = vand.u32 2147483647, %v20
    %v33 = vand.u32 %v32, 8388607
    %v34 = vor.u32 %v33, 8388608
    %v35 = vsub.s32 0, %v34
    %v36 = vadd.s32 %v31, 1
    %vm37 = vcmp.gt.s32.totalorder %v36, 0
    %v38 = vsel %vm37, %v36, 0
    %v39 = vshrl.u32 %v38, 5
    %v40 = vand.u32 %v38, 31
    %v41 = vsub.s32 32, %v40
    %v42 = vshrl.u32 683565275, %v41
    %v43 = vshll.u32 683565275, %v40
    %v44 = vshrl.u32 2475754826, %v41
    %v45 = vor.u32 %v43, %v44
    %v46 = vshll.u32 2475754826, %v40
    %v47 = vshrl.u32 2131351028, %v41
    %v48 = vor.u32 %v46, %v47
    %v49 = vshll.u32 2131351028, %v40
    %v50 = vshrl.u32 2102212464, %v41
    %v51 = vor.u32 %v49, %v50
    %v52 = vshll.u32 2102212464, %v40
    %v53 = vshrl.u32 920167782, %v41
    %v54 = vor.u32 %v52, %v53
    %v55 = vshll.u32 920167782, %v40
    %v56 = vshrl.u32 1326507024, %v41
    %v57 = vor.u32 %v55, %v56
    %vm58 = vcmp.lt.s32.totalorder %v39, 1
    %vm59 = vcmp.lt.s32.totalorder %v39, 2
    %vm60 = vcmp.lt.s32.totalorder %v39, 3
    %vm61 = vcmp.lt.s32.totalorder %v39, 4
    %v62 = vsel %vm58, %v42, %v45
    %v63 = vsel %vm61, %v51, 2102212464
    %v64 = vsel %vm60, %v48, %v63
    %v65 = vsel %vm59, %v62, %v64
    %v66 = vsel %vm58, %v45, %v48
    %v67 = vsel %vm61, %v54, 920167782
    %v68 = vsel %vm60, %v51, %v67
    %v69 = vsel %vm59, %v66, %v68
    %v70 = vsel %vm58, %v48, %v51
    %v71 = vsel %vm61, %v57, 1326507024
    %v72 = vsel %vm60, %v54, %v71
    %v73 = vsel %vm59, %v70, %v72
    %v74 = vshll.u32 %v34, 8
    %v75 = vand.u32 %v74, 65535
    %v76 = vshrl.u32 %v74, 16
    %v77 = vand.u32 %v73, 65535
    %v78 = vshrl.u32 %v73, 16
    %v79 = vmul.u32 %v75, %v77
    %v80 = vmul.u32 %v75, %v78
    %v81 = vmul.u32 %v76, %v77
    %v82 = vmul.u32 %v76, %v78
    %v83 = vshll.u32 %v80, 16
    %v84 = vshrl.u32 %v80, 16
    %v85 = vshll.u32 %v81, 16
    %v86 = vshrl.u32 %v81, 16
    %vm87 = vc.u32 %v79, %v83
    %v88 = vsel %vm87, 1, 0
    %v89 = vadd.s32 %v79, %v83
    %v90 = vadd.s32 %v82, %v88
    %vm91 = vc.u32 %v89, %v85
    %v92 = vsel %vm91, 1, 0
    %v93 = vadd.s32 %v89, %v85
    %v94 = vadd.s32 %v90, %v92
    %v95 = vadd.s32 %v94, %v84
    %v96 = vadd.s32 %v95, %v86
    %v97 = vand.u32 %v74, 65535
    %v98 = vshrl.u32 %v74, 16
    %v99 = vand.u32 %v69, 65535
    %v100 = vshrl.u32 %v69, 16
    %v101 = vmul.u32 %v97, %v99
    %v102 = vmul.u32 %v97, %v100
    %v103 = vmul.u32 %v98, %v99
    %v104 = vmul.u32 %v98, %v100
    %v105 = vshll.u32 %v102, 16
    %v106 = vshrl.u32 %v102, 16
    %v107 = vshll.u32 %v103, 16
    %v108 = vshrl.u32 %v103, 16
    %vm109 = vc.u32 %v101, %v105
    %v110 = vsel %vm109, 1, 0
    %v111 = vadd.s32 %v101, %v105
    %v112 = vadd.s32 %v104, %v110
    %vm113 = vc.u32 %v111, %v107
    %v114 = vsel %vm113, 1, 0
    %v115 = vadd.s32 %v111, %v107
    %v116 = vadd.s32 %v112, %v114
    %v117 = vadd.s32 %v116, %v106
    %v118 = vadd.s32 %v117, %v108
    %v119 = vmul.u32 %v74, %v65
    %v120 = vadd.s32 %v96, %v115
    %vm121 = vc.u32 %v96, %v115
    %v122 = vadd.s32 %v118, 1
    %v123 = vsel %vm121, %v122, %v118
    %v124 = vadd.s32 %v119, %v123
    %v125 = vadd.s32 %v124, 536870912
    %v126 = vshrl.u32 %v125, 30
    %v127 = vshll.u32 %v126, 30
    %v128 = vsub.s32 %v124, %v127
    %vm129 = vcmp.lt.s32.totalorder %v128, 0
    %v130 = vsub.s32 0, %v128
    %v131 = vsel %vm129, %v130, %v128
    %v132 = vclz %v131
    %v133 = vsub.s32 %v132, 2
    %vm134 = vcmp.gt.s32.totalorder 0, %v133
    %v135 = vsel %vm134, 0, %v133
    %v136 = vsub.s32 32, %v135
    %v137 = vshll.u32 %v128, %v135
    %v138 = vshrl.u32 %v120, %v136
    %v139 = vor.u32 %v137, %v138
    %v140 = vsub.s32 4294967266, %v135
    %v141 = vadd.s32 %v140, 127
    %v142 = vshll.u32 %v141, 23
    %v143 = vor.u32 4788187, %v142
    %v144 = vand.u32 2147483647, %v143
    %v146 = vcvt.s32.f32 %v139
    %v147 = vmul.f32 %v146, %v144
    %v148 = vxor.u32 %v147, 2147483648
    %v149 = vsel %vm28, %v148, %v147
    %v150 = vsub.s32 4, %v126
    %v151 = vsel %vm28, %v150, %v126
    %v152 = vsel %vm27, %v20, %v149
    %v153 = vsel %vm27, 0, %v151
    %v154 = vmul.f32 %v152, %v152
    %v155 = vmul.f32 %v154, -0.001358992
    %v156 = vadd.f32 %v155, 0.041655596
    %v157 = vmul.f32 %v154, %v156
    %v158 = vadd.f32 %v157, -0.4999988
    %v159 = vmul.f32 %v154, %v158
    %v160 = vadd.f32 1.0, %v159
    %v161 = vmul.f32 %v152, %v152
    %v162 = vmul.f32 %v161, -0.00019511016
    %v163 = vadd.f32 %v162, 0.008332121
    %v164 = vmul.f32 %v161, %v163
    %v165 = vadd.f32 %v164, -0.16666654
    %v166 = vmul.f32 %v161, %v165
    %v167 = vadd.f32 %v166, 1.0
    %v168 = vmul.f32 %v167, %v152
    %vm169 = vweird.f32 %v20
    %v170 = vadd.s32 %v153, 3
    %v171 = vand.u32 %v170, 3
    %vm172 = vcmp.lt.s32.totalorder %v171, 2
    %vm173 = vcmp.eq.s32.totalorder %v171, 0
    %v174 = vxor.u32 %v168, 2147483648
    %v175 = vsel %vm173, %v160, %v174
    %vm176 = vcmp.eq.s32.totalorder %v171, 2
    %v177 = vxor.u32 %v160, 2147483648
    %v178 = vsel %vm176, %v177, %v168
    %v179 = vsel %vm172, %v175, %v178
    %v180 = vsel %vm169, nan, %v179
    %v181 = vand.u32 2147483647, %v20
    %vm182 = vcmp.le.f32.partialorder %v181, 0.7853982
    %vm183 = vcmp.lt.s32.totalorder %v20, 0
    %v184 = vand.u32 %v20, 2139095040
    %v185 = vshrl.u32 %v184, 23
    %v186 = vsub.s32 %v185, 127
    %v187 = vand.u32 2147483647, %v20
    %v188 = vand.u32 %v187, 8388607
    %v189 = vor.u32 %v188, 8388608
    %v190 = vsub.s32 0, %v189
    %v191 = vadd.s32 %v186, 1
    %vm192 = vcmp.gt.s32.totalorder %v191, 0
    %v193 = vsel %vm192, %v191, 0
    %v194 = vshrl.u32 %v193, 5
    %v195 = vand.u32 %v193, 31
    %v196 = vsub.s32 32, %v195
    %v197 = vshrl.u32 683565275, %v196
    %v198 = vshll.u32 683565275, %v195
    %v199 = vshrl.u32 2475754826, %v196
    %v200 = vor.u32 %v198, %v199
    %v201 = vshll.u32 2475754826, %v195
    %v202 = vshrl.u32 2131351028, %v196
    %v203 = vor.u32 %v201, %v202
    %v204 = vshll.u32 2131351028, %v195
    %v205 = vshrl.u32 2102212464, %v196
    %v206 = vor.u32 %v204, %v205
    %v207 = vshll.u32 2102212464, %v195
    %v208 = vshrl.u32 920167782, %v196
    %v209 = vor.u32 %v207, %v208
    %v210 = vshll.u32 920167782, %v195
    %v211 = vshrl.u32 1326507024, %v196
    %v212 = vor.u32 %v210, %v211
    %vm213 = vcmp.lt.s32.totalorder %v194, 1
    %vm214 = vcmp.lt.s32.totalorder %v194, 2
    %vm215 = vcmp.lt.s32.totalorder %v194, 3
    %vm216 = vcmp.lt.s32.totalorder %v194, 4
    %v217 = vsel %vm213, %v197, %v200
    %v218 = vsel %vm216, %v206, 2102212464
    %v219 = vsel %vm215, %v203, %v218
    %v220 = vsel %vm214, %v217, %v219
    %v221 = vsel %vm213, %v200, %v203
    %v222 = vsel %vm216, %v209, 920167782
    %v223 = vsel %vm215, %v206, %v222
    %v224 = vsel %vm214, %v221, %v223
    %v225 = vsel %vm213, %v203, %v206
    %v226 = vsel %vm216, %v212, 1326507024
    %v227 = vsel %vm215, %v209, %v226
    %v228 = vsel %vm214, %v225, %v227
    %v229 = vshll.u32 %v189, 8
    %v230 = vand.u32 %v229, 65535
    %v231 = vshrl.u32 %v229, 16
    %v232 = vand.u32 %v228, 65535
    %v233 = vshrl.u32 %v228, 16
    %v234 = vmul.u32 %v230, %v232
    %v235 = vmul.u32 %v230, %v233
    %v236 = vmul.u32 %v231, %v232
    %v237 = vmul.u32 %v231, %v233
    %v238 = vshll.u32 %v235, 16
    %v239 = vshrl.u32 %v235, 16
    %v240 = vshll.u32 %v236, 16
    %v241 = vshrl.u32 %v236, 16
    %vm242 = vc.u32 %v234, %v238
    %v243 = vsel %vm242, 1, 0
    %v244 = vadd.s32 %v234, %v238
    %v245 = vadd.s32 %v237, %v243
    %vm246 = vc.u32 %v244, %v240
    %v247 = vsel %vm246, 1, 0
    %v248 = vadd.s32 %v244, %v240
    %v249 = vadd.s32 %v245, %v247
    %v250 = vadd.s32 %v249, %v239
    %v251 = vadd.s32 %v250, %v241
    %v252 = vand.u32 %v229, 65535
    %v253 = vshrl.u32 %v229, 16
    %v254 = vand.u32 %v224, 65535
    %v255 = vshrl.u32 %v224, 16
    %v256 = vmul.u32 %v252, %v254
    %v257 = vmul.u32 %v252, %v255
    %v258 = vmul.u32 %v253, %v254
    %v259 = vmul.u32 %v253, %v255
    %v260 = vshll.u32 %v257, 16
    %v261 = vshrl.u32 %v257, 16
    %v262 = vshll.u32 %v258, 16
    %v263 = vshrl.u32 %v258, 16
    %vm264 = vc.u32 %v256, %v260
    %v265 = vsel %vm264, 1, 0
    %v266 = vadd.s32 %v256, %v260
    %v267 = vadd.s32 %v259, %v265
    %vm268 = vc.u32 %v266, %v262
    %v269 = vsel %vm268, 1, 0
    %v270 = vadd.s32 %v266, %v262
    %v271 = vadd.s32 %v267, %v269
    %v272 = vadd.s32 %v271, %v261
    %v273 = vadd.s32 %v272, %v263
    %v274 = vmul.u32 %v229, %v220
    %v275 = vadd.s32 %v251, %v270
    %vm276 = vc.u32 %v251, %v270
    %v277 = vadd.s32 %v273, 1
    %v278 = vsel %vm276, %v277, %v273
    %v279 = vadd.s32 %v274, %v278
    %v280 = vadd.s32 %v279, 536870912
    %v281 = vshrl.u32 %v280, 30
    %v282 = vshll.u32 %v281, 30
    %v283 = vsub.s32 %v279, %v282
    %vm284 = vcmp.lt.s32.totalorder %v283, 0
    %v285 = vsub.s32 0, %v283
    %v286 = vsel %vm284, %v285, %v283
    %v287 = vclz %v286
    %v288 = vsub.s32 %v287, 2
    %vm289 = vcmp.gt.s32.totalorder 0, %v288
    %v290 = vsel %vm289, 0, %v288
    %v291 = vsub.s32 32, %v290
    %v292 = vshll.u32 %v283, %v290
    %v293 = vshrl.u32 %v275, %v291
    %v294 = vor.u32 %v292, %v293
    %v295 = vsub.s32 4294967266, %v290
    %v296 = vadd.s32 %v295, 127
    %v297 = vshll.u32 %v296, 23
    %v298 = vor.u32 4788187, %v297
    %v299 = vand.u32 2147483647, %v298
    %v301 = vcvt.s32.f32 %v294
    %v302 = vmul.f32 %v301, %v299
    %v303 = vxor.u32 %v302, 2147483648
    %v304 = vsel %vm183, %v303, %v302
    %v305 = vsub.s32 4, %v281
    %v306 = vsel %vm183, %v305, %v281
    %v307 = vsel %vm182, %v20, %v304
    %v308 = vsel %vm182, 0, %v306
    %v309 = vmul.f32 %v307, %v307
    %v310 = vmul.f32 %v309, -0.001358992
    %v311 = vadd.f32 %v310, 0.041655596
    %v312 = vmul.f32 %v309, %v311
    %v313 = vadd.f32 %v312, -0.4999988
    %v314 = vmul.f32 %v309, %v313
    %v315 = vadd.f32 1.0, %v314
    %v316 = vmul.f32 %v307, %v307
    %v317 = vmul.f32 %v316, -0.00019511016
    %v318 = vadd.f32 %v317, 0.008332121
    %v319 = vmul.f32 %v316, %v318
    %v320 = vadd.f32 %v319, -0.16666654
    %v321 = vmul.f32 %v316, %v320
    %v322 = vadd.f32 %v321, 1.0
    %v323 = vmul.f32 %v322, %v307
    %vm324 = vweird.f32 %v20
    %v325 = vand.u32 %v308, 3
    %vm326 = vcmp.lt.s32.totalorder %v325, 2
    %vm327 = vcmp.eq.s32.totalorder %v325, 0
    %v328 = vxor.u32 %v323, 2147483648
    %v329 = vsel %vm327, %v315, %v328
    %vm330 = vcmp.eq.s32.totalorder %v325, 2
    %v331 = vxor.u32 %v315, 2147483648
    %v332 = vsel %vm330, %v331, %v323
    %v333 = vsel %vm326, %v329, %v332
    %v334 = vsel %vm324, nan, %v333
    %vm335 = vcmask 130048
    %v337 = vsel %vm335, %v334, 0
    %339 = vmatpush.msra.mxu0 0.0
    %340 = vmatpush.msra.mxu0 0.0
    %341 = vmatpush.msra.mxu0 0.0
    %342 = vmatpush.msra.mxu0 0.0
    %343 = vmatpush.msra.mxu0 0.0
    %344 = vmatpush.msra.mxu0 0.0
    %345 = vmatpush.msra.mxu0 0.0
    %346 = vmatpush.msra.mxu0 0.0
    %347 = vmatpush.msra.mxu0 0.0
    %348 = vmatpush.msra.mxu0 0.0
    %349 = vmatpush.msra.mxu0 0.0
    %350 = vmatpush.msra.mxu0 0.0
    %351 = vmatpush.msra.mxu0 0.0
    %352 = vmatpush.msra.mxu0 0.0
    %353 = vmatpush.msra.mxu0 %v24
    %354 = vmatpush.msra.mxu0 %v23
    %355 = vmatmul.f32.gmra.mxu0 %v337
    %v356 = vpop.f32.mrf.mxu0
    %v357 = vadd.f32 0.0, %v356
    %358 = vdwg.mxu0
    %v360 = vsel %vm335, %v180, 0
    %362 = vmatpush.msra.mxu0 0.0
    %363 = vmatpush.msra.mxu0 0.0
    %364 = vmatpush.msra.mxu0 0.0
    %365 = vmatpush.msra.mxu0 0.0
    %366 = vmatpush.msra.mxu0 0.0
    %367 = vmatpush.msra.mxu0 0.0
    %368 = vmatpush.msra.mxu0 0.0
    %369 = vmatpush.msra.mxu0 0.0
    %370 = vmatpush.msra.mxu0 0.0
    %371 = vmatpush.msra.mxu0 0.0
    %372 = vmatpush.msra.mxu0 0.0
    %373 = vmatpush.msra.mxu0 0.0
    %374 = vmatpush.msra.mxu0 0.0
    %375 = vmatpush.msra.mxu0 0.0
    %376 = vmatpush.msra.mxu0 %v22
    %377 = vmatpush.msra.mxu0 %v21
    %378 = vmatmul.f32.gmra.mxu0 %v360
    %v379 = vpop.f32.mrf.mxu0
    %v380 = vadd.f32 %v357, %v379
    %381 = vdwg.mxu0
    %v382 = vperm.slane %v25, 0
    %v383 = vadd.f32 %v380, %v382
    %v384 = vxor.u32 %v383, 2147483648
    %v385 = vmul.f32 %v384, 1.442695
    %v386 = vpow.pop %v385
    %v387 = vadd.f32 %v386, 1.0
    %v388 = vrcp.pop %v387
    %v389 = vmul.f32 %v387, %v388
    %v390 = vsub.f32 1.0, %v389
    %v391 = vmul.f32 %v388, %v390
    %v392 = vadd.f32 %v388, %v391
    %vm393 = vweird.f32 %v387
    %vm394 = vweird.f32 %v388
    %vm395 = vmor %vm393, %vm394
    %v396 = vsel %vm395, %v388, %v392
    %v397 = vand.u32 2147483647, %v387
    %vm398 = vcmp.eq.f32.partialorder %v397, 8.507059e+37
    %v399 = vand.u32 %v387, 2147483648
    %v400 = vor.u32 1.1754944e-38, %v399
    %v401 = vsel %vm398, %v400, %v396
    %v402 = vmul.f32 1.0, %v401
    %v403 = vmul.f32 %v383, %v402
    %v404 = vld [vmem:[%s1 + $0x30] sm:$0xff]
    %v405 = vld [vmem:[%s1 + $0x38] sm:$0xff]
    %v406 = vld [vmem:[%s1 + $0x40] sm:$0xff]
    %v407 = vld [vmem:[%s1 + $0x48] sm:$0xff]
    %v408 = vld [vmem:[%s1 + $0x50] sm:$0xff]
    %v409 = vld [vmem:[%s1 + $0x58] sm:$0xff]
    %v410 = vld [vmem:[%s1 + $0x60] sm:$0xff]
    %v411 = vld [vmem:[%s1 + $0x68] sm:$0xff]
    %v412 = vld [vmem:[%s1 + $0x70] sm:$0x1]
    %v413 = vperm.slane %v412, 0
    %vm414 = vcmask 523264
    %v416 = vsel %vm414, %v403, 0
    %418 = vmatpush.msra.mxu0 0.0
    %419 = vmatpush.msra.mxu0 0.0
    %420 = vmatpush.msra.mxu0 0.0
    %421 = vmatpush.msra.mxu0 0.0
    %422 = vmatpush.msra.mxu0 0.0
    %423 = vmatpush.msra.mxu0 0.0
    %424 = vmatpush.msra.mxu0 0.0
    %425 = vmatpush.msra.mxu0 0.0
    %426 = vmatpush.msra.mxu0 %v411
    %427 = vmatpush.msra.mxu0 %v410
    %428 = vmatpush.msra.mxu0 %v409
    %429 = vmatpush.msra.mxu0 %v408
    %430 = vmatpush.msra.mxu0 %v407
    %431 = vmatpush.msra.mxu0 %v406
    %432 = vmatpush.msra.mxu0 %v405
    %433 = vmatpush.msra.mxu0 %v404
    %434 = vmatmul.f32.gmra.mxu0 %v416
    %v435 = vpop.f32.mrf.mxu0
    %v436 = vadd.f32 %v413, %v435
    %437 = vdwg.mxu0
    %438 = vst.msk [vmem:[#allocation2] sm:$0xff] %vm414, %v436
    // Predicated region
    $region10: #{timestep_embedding.1} parent=1 // pred_check
      _
    $region11: #{timestep_embedding.1} parent=1 // pred_check_branch
      %440 = sbr.rel (0) target = $region13
    $region12: #{timestep_embedding.1} parent=1 // pred_region
      %442 = vsyncadd [#allocation3], 0
      %s444 = sshll.u32 [#allocation2], 4
      %s445 = int_to_ptr.vmem [resolvable:$true] %s444
      %s446 = sshll.u32 %s2, 4
      %s447 = int_to_ptr.hbm [resolvable:$true] %s446
      %449 = dma.vmem_to_hbm [thread:$0]  %s445, 128, %s447, [#allocation3]
    $region13: #{timestep_embedding.1} parent=1 // pred_fallthru
      _
    // Predicated region
    $region14: #{timestep_embedding.1} parent=1 // pred_check
      _
    $region15: #{timestep_embedding.1} parent=1 // pred_check_branch
      %451 = sbr.rel (0) target = $region17
    $region16: #{timestep_embedding.1} parent=1 // pred_region
      %453 = dma.done [#allocation3], 128
    $region17: #{timestep_embedding.1} parent=1 // pred_fallthru
      _
    %454 = vsyncpa [#allocation3], 1

</llo_original>
